<compile_context>
chip_gen: v5e
topology: v5e:2x2
jax: 0.10.0
libtpu: 0.0.40
codegen_flags: <defaults>
</compile_context>

<pallas_src>
import jax
import jax.numpy as jnp
from jax.experimental import pallas as pl
from jax.experimental.pallas import tpu as pltpu


def _round_up(x, m):
    return ((x + m - 1) // m) * m


def _hyper_fused_kernel(z_ref, w2_ref, b2_ref, w1_ref, b1_ref, o_ref, h_ref):
    """Fused hypernetwork forward.

    z_ref : (1, z_dim)                 latent row vector
    w2_ref: (z_dim, in_size * k_pad)   layer-2 weights, lane-padded per group
    b2_ref: (1, in_size * k_pad)
    w1_ref: (k_pad, n_pad)             layer-1 weights, zero-padded K and N
    b1_ref: (1, n_pad)
    o_ref : (in_size, n_pad)           lane-dense output (n_pad multiple of 128)
    h_ref : (in_size, k_pad)           VMEM scratch holding the .view()'d h_in
    """
    in_size, k_pad = h_ref.shape

    # ---- layer "w2": h_flat = z @ w2 + b2  -> (1, in_size * k_pad) ----
    h_flat = (
        jnp.dot(z_ref[...], w2_ref[...], preferred_element_type=jnp.float32)
        + b2_ref[...]
    )

    # ---- torch .view(in_size, z_dim): scatter 128-lane-aligned chunks of the
    #      flat result into rows of the VMEM scratch (chunk i == row i). ----
    for i in range(in_size):  # static unroll (16 iters), all slices vreg-aligned
        h_ref[pl.ds(i, 1), :] = h_flat[:, i * k_pad:(i + 1) * k_pad]

    # ---- layer "w1": o = h_in @ w1 + b1  -> (in_size, n_pad), lane-dense ----
    o_ref[...] = (
        jnp.dot(h_ref[...], w1_ref[...], preferred_element_type=jnp.float32)
        + b1_ref[...]
    )


def _hyper_forward(z_row, w2p, b2p, w1p, b1p, *, in_size, k_pad, n_pad):
    """Single-invocation (no grid) fused pallas_call; all operands in VMEM."""
    return pl.pallas_call(
        _hyper_fused_kernel,
        out_shape=jax.ShapeDtypeStruct((in_size, n_pad), jnp.float32),
        in_specs=[pl.BlockSpec(memory_space=pltpu.MemorySpace.VMEM)] * 5,
        out_specs=pl.BlockSpec(memory_space=pltpu.MemorySpace.VMEM),
        scratch_shapes=[pltpu.VMEM((in_size, k_pad), jnp.float32)],
    )(z_row, w2p, b2p, w1p, b1p)


class HyperNetworkPallas:
    """JAX/Pallas port of the PyTorch HyperNetwork module."""

    def __init__(self, key, f_size=3, z_dim=64, out_size=16, in_size=16):
        self.z_dim = z_dim
        self.f_size = f_size
        self.out_size = out_size
        self.in_size = in_size
        self.n_out = out_size * f_size * f_size  # 144 for defaults

        k1, k2, k3, k4 = jax.random.split(key, 4)
        # torch.fmod(torch.randn(...), 2) equivalent
        self.w1 = jnp.fmod(
            jax.random.normal(k1, (z_dim, self.n_out), jnp.float32), 2.0
        )
        self.b1 = jnp.fmod(jax.random.normal(k2, (self.n_out,), jnp.float32), 2.0)
        self.w2 = jnp.fmod(
            jax.random.normal(k3, (z_dim, in_size * z_dim), jnp.float32), 2.0
        )
        self.b2 = jnp.fmod(
            jax.random.normal(k4, (in_size * z_dim,), jnp.float32), 2.0
        )

        # ---- one-time, host-side re-packing of the STATIC weights ----------
        # k_pad: per-row width of the intermediate scratch (lane multiple)
        # n_pad: lane-dense output width (144 -> 256)
        self.k_pad = _round_up(z_dim, 128)
        self.n_pad = _round_up(self.n_out, 128)

        # w2 columns regrouped so group i occupies an aligned k_pad-wide chunk
        w2_3d = self.w2.reshape(z_dim, in_size, z_dim)
        self.w2p = jnp.pad(
            w2_3d, ((0, 0), (0, 0), (0, self.k_pad - z_dim))
        ).reshape(z_dim, in_size * self.k_pad)
        self.b2p = jnp.pad(
            self.b2.reshape(in_size, z_dim), ((0, 0), (0, self.k_pad - z_dim))
        ).reshape(1, in_size * self.k_pad)

        # w1 zero-padded: extra K rows multiply the zero-padded h columns,
        # extra N columns produce exact zeros that are sliced off afterwards.
        self.w1p = jnp.pad(
            self.w1, ((0, self.k_pad - z_dim), (0, self.n_pad - self.n_out))
        )
        self.b1p = jnp.pad(self.b1, (0, self.n_pad - self.n_out)).reshape(
            1, self.n_pad
        )

    def __call__(self, z):
        # z: (z_dim,)
        z_row = z.reshape(1, self.z_dim).astype(jnp.float32)

        h_final_padded = _hyper_forward(
            z_row, self.w2p, self.b2p, self.w1p, self.b1p,
            in_size=self.in_size, k_pad=self.k_pad, n_pad=self.n_pad,
        )  # (in_size, n_pad)

        h_final = h_final_padded[:, : self.n_out]  # (in_size, out_size*f*f)
        # .view(out_size, in_size, f, f): flat row-major reinterpretation, as in torch
        return h_final.reshape(
            self.out_size, self.in_size, self.f_size, self.f_size
        )


def _reference(net, z):
    z_row = z.reshape(1, net.z_dim).astype(jnp.float32)
    h_in = (z_row @ net.w2 + net.b2).reshape(net.in_size, net.z_dim)
    h_final = h_in @ net.w1 + net.b1
    return h_final.reshape(net.out_size, net.in_size, net.f_size, net.f_size)


if __name__ == "__main__":
    key = jax.random.PRNGKey(0)
    kparam, kz = jax.random.split(key)

    # Module-default sizes: f_size=3, z_dim=64, out_size=16, in_size=16
    net = HyperNetworkPallas(kparam, f_size=3, z_dim=64, out_size=16, in_size=16)

    z = jax.random.normal(kz, (net.z_dim,), jnp.float32)

    out = net(z)
    out = jax.block_until_ready(out)

    ref = _reference(net, z)
    assert out.shape == (16, 16, 3, 3), out.shape
    assert jnp.allclose(out, ref, atol=1e-4, rtol=1e-4), "mismatch vs JAX reference"

    print("KERNEL_OK")
</pallas_src>

<mosaic_0001>
module attributes {stable_mosaic.version = 11 : i64} {
  func.func @_hyper_fused_kernel(%arg0: memref<1x64xf32, #tpu.memory_space<vmem>>, %arg1: memref<64x2048xf32, #tpu.memory_space<vmem>>, %arg2: memref<1x2048xf32, #tpu.memory_space<vmem>>, %arg3: memref<128x256xf32, #tpu.memory_space<vmem>>, %arg4: memref<1x256xf32, #tpu.memory_space<vmem>>, %arg5: memref<16x256xf32, #tpu.memory_space<vmem>>, %arg6: memref<16x128xf32, #tpu.memory_space<vmem>>) attributes {dimension_semantics = [], scalar_prefetch = 0 : i64, scratch_operands = 1 : i64, tpu.core_type = #tpu.core_type<tc>} {
    %c0 = arith.constant 0 : index
    %c0_0 = arith.constant 0 : index
    %0 = vector.load %arg0[%c0, %c0_0] : memref<1x64xf32, #tpu.memory_space<vmem>>, vector<1x64xf32>
    %c0_1 = arith.constant 0 : index
    %c0_2 = arith.constant 0 : index
    %1 = vector.load %arg1[%c0_1, %c0_2] : memref<64x2048xf32, #tpu.memory_space<vmem>>, vector<64x2048xf32>
    %cst = arith.constant dense<0.000000e+00> : vector<1x2048xf32>
    %2 = tpu.matmul %0, %1, %cst {dimension_numbers = #tpu.dot_dimension_numbers<[1], [0], [0], [1], [0, 0, 1, 1], [], []>} : vector<1x64xf32>, vector<64x2048xf32>, vector<1x2048xf32> -> vector<1x2048xf32>
    %c0_3 = arith.constant 0 : index
    %c0_4 = arith.constant 0 : index
    %3 = vector.load %arg2[%c0_3, %c0_4] : memref<1x2048xf32, #tpu.memory_space<vmem>>, vector<1x2048xf32>
    %4 = arith.addf %2, %3 : vector<1x2048xf32>
    %5 = vector.extract_strided_slice %4 {offsets = [0, 0], sizes = [1, 128], strides = [1, 1]} : vector<1x2048xf32> to vector<1x128xf32>
    %c0_5 = arith.constant 0 : index
    %c0_6 = arith.constant 0 : index
    %6 = vector.load %arg6[%c0_5, %c0_6] : memref<16x128xf32, #tpu.memory_space<vmem>>, vector<1x128xf32>
    tpu.vector_store %arg6[%c0_5, %c0_6], %5 {strides = array<i32>} : memref<16x128xf32, #tpu.memory_space<vmem>>, vector<1x128xf32>,
    %7 = vector.extract_strided_slice %4 {offsets = [0, 128], sizes = [1, 128], strides = [1, 1]} : vector<1x2048xf32> to vector<1x128xf32>
    %c1 = arith.constant 1 : index
    %c0_7 = arith.constant 0 : index
    %8 = vector.load %arg6[%c1, %c0_7] : memref<16x128xf32, #tpu.memory_space<vmem>>, vector<1x128xf32>
    tpu.vector_store %arg6[%c1, %c0_7], %7 {strides = array<i32>} : memref<16x128xf32, #tpu.memory_space<vmem>>, vector<1x128xf32>,
    %9 = vector.extract_strided_slice %4 {offsets = [0, 256], sizes = [1, 128], strides = [1, 1]} : vector<1x2048xf32> to vector<1x128xf32>
    %c2 = arith.constant 2 : index
    %c0_8 = arith.constant 0 : index
    %10 = vector.load %arg6[%c2, %c0_8] : memref<16x128xf32, #tpu.memory_space<vmem>>, vector<1x128xf32>
    tpu.vector_store %arg6[%c2, %c0_8], %9 {strides = array<i32>} : memref<16x128xf32, #tpu.memory_space<vmem>>, vector<1x128xf32>,
    %11 = vector.extract_strided_slice %4 {offsets = [0, 384], sizes = [1, 128], strides = [1, 1]} : vector<1x2048xf32> to vector<1x128xf32>
    %c3 = arith.constant 3 : index
    %c0_9 = arith.constant 0 : index
    %12 = vector.load %arg6[%c3, %c0_9] : memref<16x128xf32, #tpu.memory_space<vmem>>, vector<1x128xf32>
    tpu.vector_store %arg6[%c3, %c0_9], %11 {strides = array<i32>} : memref<16x128xf32, #tpu.memory_space<vmem>>, vector<1x128xf32>,
    %13 = vector.extract_strided_slice %4 {offsets = [0, 512], sizes = [1, 128], strides = [1, 1]} : vector<1x2048xf32> to vector<1x128xf32>
    %c4 = arith.constant 4 : index
    %c0_10 = arith.constant 0 : index
    %14 = vector.load %arg6[%c4, %c0_10] : memref<16x128xf32, #tpu.memory_space<vmem>>, vector<1x128xf32>
    tpu.vector_store %arg6[%c4, %c0_10], %13 {strides = array<i32>} : memref<16x128xf32, #tpu.memory_space<vmem>>, vector<1x128xf32>,
    %15 = vector.extract_strided_slice %4 {offsets = [0, 640], sizes = [1, 128], strides = [1, 1]} : vector<1x2048xf32> to vector<1x128xf32>
    %c5 = arith.constant 5 : index
    %c0_11 = arith.constant 0 : index
    %16 = vector.load %arg6[%c5, %c0_11] : memref<16x128xf32, #tpu.memory_space<vmem>>, vector<1x128xf32>
    tpu.vector_store %arg6[%c5, %c0_11], %15 {strides = array<i32>} : memref<16x128xf32, #tpu.memory_space<vmem>>, vector<1x128xf32>,
    %17 = vector.extract_strided_slice %4 {offsets = [0, 768], sizes = [1, 128], strides = [1, 1]} : vector<1x2048xf32> to vector<1x128xf32>
    %c6 = arith.constant 6 : index
    %c0_12 = arith.constant 0 : index
    %18 = vector.load %arg6[%c6, %c0_12] : memref<16x128xf32, #tpu.memory_space<vmem>>, vector<1x128xf32>
    tpu.vector_store %arg6[%c6, %c0_12], %17 {strides = array<i32>} : memref<16x128xf32, #tpu.memory_space<vmem>>, vector<1x128xf32>,
    %19 = vector.extract_strided_slice %4 {offsets = [0, 896], sizes = [1, 128], strides = [1, 1]} : vector<1x2048xf32> to vector<1x128xf32>
    %c7 = arith.constant 7 : index
    %c0_13 = arith.constant 0 : index
    %20 = vector.load %arg6[%c7, %c0_13] : memref<16x128xf32, #tpu.memory_space<vmem>>, vector<1x128xf32>
    tpu.vector_store %arg6[%c7, %c0_13], %19 {strides = array<i32>} : memref<16x128xf32, #tpu.memory_space<vmem>>, vector<1x128xf32>,
    %21 = vector.extract_strided_slice %4 {offsets = [0, 1024], sizes = [1, 128], strides = [1, 1]} : vector<1x2048xf32> to vector<1x128xf32>
    %c8 = arith.constant 8 : index
    %c0_14 = arith.constant 0 : index
    %22 = vector.load %arg6[%c8, %c0_14] : memref<16x128xf32, #tpu.memory_space<vmem>>, vector<1x128xf32>
    tpu.vector_store %arg6[%c8, %c0_14], %21 {strides = array<i32>} : memref<16x128xf32, #tpu.memory_space<vmem>>, vector<1x128xf32>,
    %23 = vector.extract_strided_slice %4 {offsets = [0, 1152], sizes = [1, 128], strides = [1, 1]} : vector<1x2048xf32> to vector<1x128xf32>
    %c9 = arith.constant 9 : index
    %c0_15 = arith.constant 0 : index
    %24 = vector.load %arg6[%c9, %c0_15] : memref<16x128xf32, #tpu.memory_space<vmem>>, vector<1x128xf32>
    tpu.vector_store %arg6[%c9, %c0_15], %23 {strides = array<i32>} : memref<16x128xf32, #tpu.memory_space<vmem>>, vector<1x128xf32>,
    %25 = vector.extract_strided_slice %4 {offsets = [0, 1280], sizes = [1, 128], strides = [1, 1]} : vector<1x2048xf32> to vector<1x128xf32>
    %c10 = arith.constant 10 : index
    %c0_16 = arith.constant 0 : index
    %26 = vector.load %arg6[%c10, %c0_16] : memref<16x128xf32, #tpu.memory_space<vmem>>, vector<1x128xf32>
    tpu.vector_store %arg6[%c10, %c0_16], %25 {strides = array<i32>} : memref<16x128xf32, #tpu.memory_space<vmem>>, vector<1x128xf32>,
    %27 = vector.extract_strided_slice %4 {offsets = [0, 1408], sizes = [1, 128], strides = [1, 1]} : vector<1x2048xf32> to vector<1x128xf32>
    %c11 = arith.constant 11 : index
    %c0_17 = arith.constant 0 : index
    %28 = vector.load %arg6[%c11, %c0_17] : memref<16x128xf32, #tpu.memory_space<vmem>>, vector<1x128xf32>
    tpu.vector_store %arg6[%c11, %c0_17], %27 {strides = array<i32>} : memref<16x128xf32, #tpu.memory_space<vmem>>, vector<1x128xf32>,
    %29 = vector.extract_strided_slice %4 {offsets = [0, 1536], sizes = [1, 128], strides = [1, 1]} : vector<1x2048xf32> to vector<1x128xf32>
    %c12 = arith.constant 12 : index
    %c0_18 = arith.constant 0 : index
    %30 = vector.load %arg6[%c12, %c0_18] : memref<16x128xf32, #tpu.memory_space<vmem>>, vector<1x128xf32>
    tpu.vector_store %arg6[%c12, %c0_18], %29 {strides = array<i32>} : memref<16x128xf32, #tpu.memory_space<vmem>>, vector<1x128xf32>,
    %31 = vector.extract_strided_slice %4 {offsets = [0, 1664], sizes = [1, 128], strides = [1, 1]} : vector<1x2048xf32> to vector<1x128xf32>
    %c13 = arith.constant 13 : index
    %c0_19 = arith.constant 0 : index
    %32 = vector.load %arg6[%c13, %c0_19] : memref<16x128xf32, #tpu.memory_space<vmem>>, vector<1x128xf32>
    tpu.vector_store %arg6[%c13, %c0_19], %31 {strides = array<i32>} : memref<16x128xf32, #tpu.memory_space<vmem>>, vector<1x128xf32>,
    %33 = vector.extract_strided_slice %4 {offsets = [0, 1792], sizes = [1, 128], strides = [1, 1]} : vector<1x2048xf32> to vector<1x128xf32>
    %c14 = arith.constant 14 : index
    %c0_20 = arith.constant 0 : index
    %34 = vector.load %arg6[%c14, %c0_20] : memref<16x128xf32, #tpu.memory_space<vmem>>, vector<1x128xf32>
    tpu.vector_store %arg6[%c14, %c0_20], %33 {strides = array<i32>} : memref<16x128xf32, #tpu.memory_space<vmem>>, vector<1x128xf32>,
    %35 = vector.extract_strided_slice %4 {offsets = [0, 1920], sizes = [1, 128], strides = [1, 1]} : vector<1x2048xf32> to vector<1x128xf32>
    %c15 = arith.constant 15 : index
    %c0_21 = arith.constant 0 : index
    %36 = vector.load %arg6[%c15, %c0_21] : memref<16x128xf32, #tpu.memory_space<vmem>>, vector<1x128xf32>
    tpu.vector_store %arg6[%c15, %c0_21], %35 {strides = array<i32>} : memref<16x128xf32, #tpu.memory_space<vmem>>, vector<1x128xf32>,
    %c0_22 = arith.constant 0 : index
    %c0_23 = arith.constant 0 : index
    %37 = vector.load %arg6[%c0_22, %c0_23] : memref<16x128xf32, #tpu.memory_space<vmem>>, vector<16x128xf32>
    %c0_24 = arith.constant 0 : index
    %c0_25 = arith.constant 0 : index
    %38 = vector.load %arg3[%c0_24, %c0_25] : memref<128x256xf32, #tpu.memory_space<vmem>>, vector<128x256xf32>
    %cst_26 = arith.constant dense<0.000000e+00> : vector<16x256xf32>
    %39 = tpu.matmul %37, %38, %cst_26 {dimension_numbers = #tpu.dot_dimension_numbers<[1], [0], [0], [1], [0, 0, 1, 1], [], []>} : vector<16x128xf32>, vector<128x256xf32>, vector<16x256xf32> -> vector<16x256xf32>
    %c0_27 = arith.constant 0 : index
    %c0_28 = arith.constant 0 : index
    %40 = vector.load %arg4[%c0_27, %c0_28] : memref<1x256xf32, #tpu.memory_space<vmem>>, vector<1x256xf32>
    %41 = vector.broadcast %40 : vector<1x256xf32> to vector<16x256xf32>
    %42 = arith.addf %39, %41 : vector<16x256xf32>
    %c0_29 = arith.constant 0 : index
    %c0_30 = arith.constant 0 : index
    %43 = vector.load %arg5[%c0_29, %c0_30] : memref<16x256xf32, #tpu.memory_space<vmem>>, vector<16x256xf32>
    tpu.vector_store %arg5[%c0_29, %c0_30], %42 {strides = array<i32>} : memref<16x256xf32, #tpu.memory_space<vmem>>, vector<16x256xf32>,
    return
  }
}

</mosaic_0001>

<llo_original>
// kernel: tpu_custom_call.1
$region0: #{tpu_custom_call.1}
  #allocation0 [shape = 'u32[]', space=smem, size = 0x4, offset = 0x4, fixed_abs, tag = 'smem constant byte address 0x4 - core index']
  #allocation1 [shape = 'u32[72,128]{1,0:T(1,128)}', space=vmem, size = 0x9000, scoped, tag = 'internal scratch']
  #allocation2 [shape = 'f32[16,128]{1,0:T(8,128)}', space=vmem, size = 0x2000, scoped, tag = 'scratch operand']
  %s0 = inlined_call_operand.hbm [shape: f32[1,64], index: 0, kind: input, shape index: {}]
  %s1 = inlined_call_operand.hbm [shape: f32[64,2048], index: 1, kind: input, shape index: {}]
  %s2 = inlined_call_operand.hbm [shape: f32[1,2048], index: 2, kind: input, shape index: {}]
  %s3 = inlined_call_operand.hbm [shape: f32[128,256], index: 3, kind: input, shape index: {}]
  %s4 = inlined_call_operand.vmem [shape: f32[1,256], index: 4, kind: input, shape index: {}]
  %s5 = inlined_call_operand.hbm [shape: f32[16,256], index: 5, kind: output, shape index: {}]
  %s6 = sld [smem:[#allocation0]]
  $region46: #{tpu_custom_call.1} parent=0
    _
  %s8 = ssub.s32 1, %s6
  %s9 = scalar_select 0, %s8, %s6
  $region1: #{tpu_custom_call.1} parent=0
    #allocation3 [shape = 'u8[512]{0}', space=vmem, size = 0x400, scoped, tag = 'input window, operand 0, single buffered']
    #allocation4 [shape = 's32[1]{0}', space=sflag, size = 0x4, scoped, tag = 'scoped memory for tpu_custom_call.1']
    #allocation5 [shape = 's32[1]{0}', space=sflag, size = 0x4, scoped, tag = 'scoped memory for tpu_custom_call.1']
    #allocation6 [shape = 'u8[524288]{0}', space=vmem, size = 0x80000, scoped, tag = 'input window, operand 1, single buffered']
    #allocation7 [shape = 's32[1]{0}', space=sflag, size = 0x4, scoped, tag = 'scoped memory for tpu_custom_call.1']
    #allocation8 [shape = 'u8[8192]{0}', space=vmem, size = 0x2000, scoped, tag = 'input window, operand 2, single buffered']
    #allocation9 [shape = 'u8[131072]{0}', space=vmem, size = 0x20000, scoped, tag = 'input window, operand 3, single buffered']
    #allocation10 [shape = 's32[1]{0}', space=sflag, size = 0x4, scoped, tag = 'scoped memory for tpu_custom_call.1']
    #allocation11 [shape = 'u8[16384]{0}', space=vmem, size = 0x4000, scoped, tag = 'output window, operand 0, single buffered']
    %10 = vsyncpa [#allocation4], 0
    %11 = vsyncpa [#allocation7], 0
    %12 = vsyncpa [#allocation10], 0
    %13 = vsyncpa [#allocation5], 0
    // Predicated region
    $region2: #{tpu_custom_call.1} parent=1 // pred_check
      _
    $region3: #{tpu_custom_call.1} parent=1 // pred_check_branch
      %15 = sbr.rel (0) target = $region5
    $region4: #{tpu_custom_call.1} parent=1 // pred_region
      %17 = vsyncadd [#allocation4], 0
      %s19 = sshll.u32 %s0, 4
      %s20 = int_to_ptr.hbm [resolvable:$true] %s19
      %s21 = sshll.u32 [#allocation3], 4
      %s22 = int_to_ptr.vmem [resolvable:$true] %s21
      %24 = dma.hbm_to_vmem [thread:$0]  %s20, 16, %s22, [#allocation4]
    $region5: #{tpu_custom_call.1} parent=1 // pred_fallthru
      _
    // Predicated region
    $region6: #{tpu_custom_call.1} parent=1 // pred_check
      _
    $region7: #{tpu_custom_call.1} parent=1 // pred_check_branch
      %26 = sbr.rel (0) target = $region9
    $region8: #{tpu_custom_call.1} parent=1 // pred_region
      %28 = vsyncadd [#allocation7], 0
      %s29 = sshll.u32 %s1, 4
      %s30 = int_to_ptr.hbm [resolvable:$true] %s29
      %s31 = sshll.u32 [#allocation6], 4
      %s32 = int_to_ptr.vmem [resolvable:$true] %s31
      %37 = dma.hbm_to_vmem [thread:$0]  %s30, 16384, %s32, [#allocation7], 2048, 2048, 128
    $region9: #{tpu_custom_call.1} parent=1 // pred_fallthru
      _
    // Predicated region
    $region10: #{tpu_custom_call.1} parent=1 // pred_check
      _
    $region11: #{tpu_custom_call.1} parent=1 // pred_check_branch
      %39 = sbr.rel (0) target = $region13
    $region12: #{tpu_custom_call.1} parent=1 // pred_region
      %41 = vsyncadd [#allocation7], 0
      %s43 = sshll.u32 %s2, 4
      %s44 = int_to_ptr.hbm [resolvable:$true] %s43
      %s45 = sshll.u32 [#allocation8], 4
      %s46 = int_to_ptr.vmem [resolvable:$true] %s45
      %48 = dma.hbm_to_vmem [thread:$0]  %s44, 256, %s46, [#allocation7]
    $region13: #{tpu_custom_call.1} parent=1 // pred_fallthru
      _
    // Predicated region
    $region14: #{tpu_custom_call.1} parent=1 // pred_check
      _
    $region15: #{tpu_custom_call.1} parent=1 // pred_check_branch
      %50 = sbr.rel (0) target = $region17
    $region16: #{tpu_custom_call.1} parent=1 // pred_region
      %52 = vsyncadd [#allocation10], 0
      %s53 = sshll.u32 %s3, 4
      %s54 = int_to_ptr.hbm [resolvable:$true] %s53
      %s55 = sshll.u32 [#allocation9], 4
      %s56 = int_to_ptr.vmem [resolvable:$true] %s55
      %61 = dma.hbm_to_vmem [thread:$0]  %s54, 4096, %s56, [#allocation10], 256, 256, 16
    $region17: #{tpu_custom_call.1} parent=1 // pred_fallthru
      _
    // Predicated region
    $region18: #{tpu_custom_call.1} parent=1 // pred_check
      _
    $region19: #{tpu_custom_call.1} parent=1 // pred_check_branch
      %63 = sbr.rel (0) target = $region21
    $region20: #{tpu_custom_call.1} parent=1 // pred_region
      _
    $region21: #{tpu_custom_call.1} parent=1 // pred_fallthru
      _
    // Predicated region
    $region22: #{tpu_custom_call.1} parent=1 // pred_check
      _
    $region23: #{tpu_custom_call.1} parent=1 // pred_check_branch
      %65 = sbr.rel (0) target = $region25
    $region24: #{tpu_custom_call.1} parent=1 // pred_region
      %67 = dma.done [#allocation4], 16
    $region25: #{tpu_custom_call.1} parent=1 // pred_fallthru
      _
    // Predicated region
    $region26: #{tpu_custom_call.1} parent=1 // pred_check
      _
    $region27: #{tpu_custom_call.1} parent=1 // pred_check_branch
      %69 = sbr.rel (0) target = $region29
    $region28: #{tpu_custom_call.1} parent=1 // pred_region
      %71 = dma.done [#allocation7], 16384
    $region29: #{tpu_custom_call.1} parent=1 // pred_fallthru
      _
    // Predicated region
    $region30: #{tpu_custom_call.1} parent=1 // pred_check
      _
    $region31: #{tpu_custom_call.1} parent=1 // pred_check_branch
      %73 = sbr.rel (0) target = $region33
    $region32: #{tpu_custom_call.1} parent=1 // pred_region
      %75 = dma.done [#allocation7], 256
    $region33: #{tpu_custom_call.1} parent=1 // pred_fallthru
      _
    // Predicated region
    $region34: #{tpu_custom_call.1} parent=1 // pred_check
      _
    $region35: #{tpu_custom_call.1} parent=1 // pred_check_branch
      %77 = sbr.rel (0) target = $region37
    $region36: #{tpu_custom_call.1} parent=1 // pred_region
      %79 = dma.done [#allocation10], 4096
    $region37: #{tpu_custom_call.1} parent=1 // pred_fallthru
      _
    %v80 = vld [vmem:[#allocation3] sm:$0x1]
    %v81 = vld [vmem:[#allocation6] sm:$0xff]
    %v82 = vld [vmem:[#allocation6 + $0x8] sm:$0xff]
    %v83 = vld [vmem:[#allocation6 + $0x10] sm:$0xff]
    %v84 = vld [vmem:[#allocation6 + $0x18] sm:$0xff]
    %v85 = vld [vmem:[#allocation6 + $0x20] sm:$0xff]
    %v86 = vld [vmem:[#allocation6 + $0x28] sm:$0xff]
    %v87 = vld [vmem:[#allocation6 + $0x30] sm:$0xff]
    %v88 = vld [vmem:[#allocation6 + $0x38] sm:$0xff]
    %v89 = vld [vmem:[#allocation6 + $0x40] sm:$0xff]
    %v90 = vld [vmem:[#allocation6 + $0x48] sm:$0xff]
    %v91 = vld [vmem:[#allocation6 + $0x50] sm:$0xff]
    %v92 = vld [vmem:[#allocation6 + $0x58] sm:$0xff]
    %v93 = vld [vmem:[#allocation6 + $0x60] sm:$0xff]
    %v94 = vld [vmem:[#allocation6 + $0x68] sm:$0xff]
    %v95 = vld [vmem:[#allocation6 + $0x70] sm:$0xff]
    %v96 = vld [vmem:[#allocation6 + $0x78] sm:$0xff]
    %v97 = vld [vmem:[#allocation6 + $0x80] sm:$0xff]
    %v98 = vld [vmem:[#allocation6 + $0x88] sm:$0xff]
    %v99 = vld [vmem:[#allocation6 + $0x90] sm:$0xff]
    %v100 = vld [vmem:[#allocation6 + $0x98] sm:$0xff]
    %v101 = vld [vmem:[#allocation6 + $0xa0] sm:$0xff]
    %v102 = vld [vmem:[#allocation6 + $0xa8] sm:$0xff]
    %v103 = vld [vmem:[#allocation6 + $0xb0] sm:$0xff]
    %v104 = vld [vmem:[#allocation6 + $0xb8] sm:$0xff]
    %v105 = vld [vmem:[#allocation6 + $0xc0] sm:$0xff]
    %v106 = vld [vmem:[#allocation6 + $0xc8] sm:$0xff]
    %v107 = vld [vmem:[#allocation6 + $0xd0] sm:$0xff]
    %v108 = vld [vmem:[#allocation6 + $0xd8] sm:$0xff]
    %v109 = vld [vmem:[#allocation6 + $0xe0] sm:$0xff]
    %v110 = vld [vmem:[#allocation6 + $0xe8] sm:$0xff]
    %v111 = vld [vmem:[#allocation6 + $0xf0] sm:$0xff]
    %v112 = vld [vmem:[#allocation6 + $0xf8] sm:$0xff]
    %v113 = vld [vmem:[#allocation6 + $0x100] sm:$0xff]
    %v114 = vld [vmem:[#allocation6 + $0x108] sm:$0xff]
    %v115 = vld [vmem:[#allocation6 + $0x110] sm:$0xff]
    %v116 = vld [vmem:[#allocation6 + $0x118] sm:$0xff]
    %v117 = vld [vmem:[#allocation6 + $0x120] sm:$0xff]
    %v118 = vld [vmem:[#allocation6 + $0x128] sm:$0xff]
    %v119 = vld [vmem:[#allocation6 + $0x130] sm:$0xff]
    %v120 = vld [vmem:[#allocation6 + $0x138] sm:$0xff]
    %v121 = vld [vmem:[#allocation6 + $0x140] sm:$0xff]
    %v122 = vld [vmem:[#allocation6 + $0x148] sm:$0xff]
    %v123 = vld [vmem:[#allocation6 + $0x150] sm:$0xff]
    %v124 = vld [vmem:[#allocation6 + $0x158] sm:$0xff]
    %v125 = vld [vmem:[#allocation6 + $0x160] sm:$0xff]
    %v126 = vld [vmem:[#allocation6 + $0x168] sm:$0xff]
    %v127 = vld [vmem:[#allocation6 + $0x170] sm:$0xff]
    %v128 = vld [vmem:[#allocation6 + $0x178] sm:$0xff]
    %v129 = vld [vmem:[#allocation6 + $0x180] sm:$0xff]
    %v130 = vld [vmem:[#allocation6 + $0x188] sm:$0xff]
    %v131 = vld [vmem:[#allocation6 + $0x190] sm:$0xff]
    %v132 = vld [vmem:[#allocation6 + $0x198] sm:$0xff]
    %v133 = vld [vmem:[#allocation6 + $0x1a0] sm:$0xff]
    %v134 = vld [vmem:[#allocation6 + $0x1a8] sm:$0xff]
    %v135 = vld [vmem:[#allocation6 + $0x1b0] sm:$0xff]
    %v136 = vld [vmem:[#allocation6 + $0x1b8] sm:$0xff]
    %v137 = vld [vmem:[#allocation6 + $0x1c0] sm:$0xff]
    %v138 = vld [vmem:[#allocation6 + $0x1c8] sm:$0xff]
    %v139 = vld [vmem:[#allocation6 + $0x1d0] sm:$0xff]
    %v140 = vld [vmem:[#allocation6 + $0x1d8] sm:$0xff]
    %v141 = vld [vmem:[#allocation6 + $0x1e0] sm:$0xff]
    %v142 = vld [vmem:[#allocation6 + $0x1e8] sm:$0xff]
    %v143 = vld [vmem:[#allocation6 + $0x1f0] sm:$0xff]
    %v144 = vld [vmem:[#allocation6 + $0x1f8] sm:$0xff]
    %v145 = vld [vmem:[#allocation6 + $0x200] sm:$0xff]
    %v146 = vld [vmem:[#allocation6 + $0x208] sm:$0xff]
    %v147 = vld [vmem:[#allocation6 + $0x210] sm:$0xff]
    %v148 = vld [vmem:[#allocation6 + $0x218] sm:$0xff]
    %v149 = vld [vmem:[#allocation6 + $0x220] sm:$0xff]
    %v150 = vld [vmem:[#allocation6 + $0x228] sm:$0xff]
    %v151 = vld [vmem:[#allocation6 + $0x230] sm:$0xff]
    %v152 = vld [vmem:[#allocation6 + $0x238] sm:$0xff]
    %v153 = vld [vmem:[#allocation6 + $0x240] sm:$0xff]
    %v154 = vld [vmem:[#allocation6 + $0x248] sm:$0xff]
    %v155 = vld [vmem:[#allocation6 + $0x250] sm:$0xff]
    %v156 = vld [vmem:[#allocation6 + $0x258] sm:$0xff]
    %v157 = vld [vmem:[#allocation6 + $0x260] sm:$0xff]
    %v158 = vld [vmem:[#allocation6 + $0x268] sm:$0xff]
    %v159 = vld [vmem:[#allocation6 + $0x270] sm:$0xff]
    %v160 = vld [vmem:[#allocation6 + $0x278] sm:$0xff]
    %v161 = vld [vmem:[#allocation6 + $0x280] sm:$0xff]
    %v162 = vld [vmem:[#allocation6 + $0x288] sm:$0xff]
    %v163 = vld [vmem:[#allocation6 + $0x290] sm:$0xff]
    %v164 = vld [vmem:[#allocation6 + $0x298] sm:$0xff]
    %v165 = vld [vmem:[#allocation6 + $0x2a0] sm:$0xff]
    %v166 = vld [vmem:[#allocation6 + $0x2a8] sm:$0xff]
    %v167 = vld [vmem:[#allocation6 + $0x2b0] sm:$0xff]
    %v168 = vld [vmem:[#allocation6 + $0x2b8] sm:$0xff]
    %v169 = vld [vmem:[#allocation6 + $0x2c0] sm:$0xff]
    %v170 = vld [vmem:[#allocation6 + $0x2c8] sm:$0xff]
    %v171 = vld [vmem:[#allocation6 + $0x2d0] sm:$0xff]
    %v172 = vld [vmem:[#allocation6 + $0x2d8] sm:$0xff]
    %v173 = vld [vmem:[#allocation6 + $0x2e0] sm:$0xff]
    %v174 = vld [vmem:[#allocation6 + $0x2e8] sm:$0xff]
    %v175 = vld [vmem:[#allocation6 + $0x2f0] sm:$0xff]
    %v176 = vld [vmem:[#allocation6 + $0x2f8] sm:$0xff]
    %v177 = vld [vmem:[#allocation6 + $0x300] sm:$0xff]
    %v178 = vld [vmem:[#allocation6 + $0x308] sm:$0xff]
    %v179 = vld [vmem:[#allocation6 + $0x310] sm:$0xff]
    %v180 = vld [vmem:[#allocation6 + $0x318] sm:$0xff]
    %v181 = vld [vmem:[#allocation6 + $0x320] sm:$0xff]
    %v182 = vld [vmem:[#allocation6 + $0x328] sm:$0xff]
    %v183 = vld [vmem:[#allocation6 + $0x330] sm:$0xff]
    %v184 = vld [vmem:[#allocation6 + $0x338] sm:$0xff]
    %v185 = vld [vmem:[#allocation6 + $0x340] sm:$0xff]
    %v186 = vld [vmem:[#allocation6 + $0x348] sm:$0xff]
    %v187 = vld [vmem:[#allocation6 + $0x350] sm:$0xff]
    %v188 = vld [vmem:[#allocation6 + $0x358] sm:$0xff]
    %v189 = vld [vmem:[#allocation6 + $0x360] sm:$0xff]
    %v190 = vld [vmem:[#allocation6 + $0x368] sm:$0xff]
    %v191 = vld [vmem:[#allocation6 + $0x370] sm:$0xff]
    %v192 = vld [vmem:[#allocation6 + $0x378] sm:$0xff]
    %v193 = vld [vmem:[#allocation6 + $0x380] sm:$0xff]
    %v194 = vld [vmem:[#allocation6 + $0x388] sm:$0xff]
    %v195 = vld [vmem:[#allocation6 + $0x390] sm:$0xff]
    %v196 = vld [vmem:[#allocation6 + $0x398] sm:$0xff]
    %v197 = vld [vmem:[#allocation6 + $0x3a0] sm:$0xff]
    %v198 = vld [vmem:[#allocation6 + $0x3a8] sm:$0xff]
    %v199 = vld [vmem:[#allocation6 + $0x3b0] sm:$0xff]
    %v200 = vld [vmem:[#allocation6 + $0x3b8] sm:$0xff]
    %v201 = vld [vmem:[#allocation6 + $0x3c0] sm:$0xff]
    %v202 = vld [vmem:[#allocation6 + $0x3c8] sm:$0xff]
    %v203 = vld [vmem:[#allocation6 + $0x3d0] sm:$0xff]
    %v204 = vld [vmem:[#allocation6 + $0x3d8] sm:$0xff]
    %v205 = vld [vmem:[#allocation6 + $0x3e0] sm:$0xff]
    %v206 = vld [vmem:[#allocation6 + $0x3e8] sm:$0xff]
    %v207 = vld [vmem:[#allocation6 + $0x3f0] sm:$0xff]
    %v208 = vld [vmem:[#allocation6 + $0x3f8] sm:$0xff]
    %v209 = vld [vmem:[#allocation8] sm:$0xff]
    %v210 = vld [vmem:[#allocation8 + $0x8] sm:$0xff]
    %v213 = vperm.slane %v209, 0
    %v214 = vperm.slane %v209, 1
    %v215 = vperm.slane %v209, 2
    %v216 = vperm.slane %v209, 3
    %v217 = vperm.slane %v209, 4
    %v218 = vperm.slane %v209, 5
    %v219 = vperm.slane %v209, 6
    %v220 = vperm.slane %v209, 7
    %v221 = vperm.slane %v210, 0
    %v222 = vperm.slane %v210, 1
    %v223 = vperm.slane %v210, 2
    %v224 = vperm.slane %v210, 3
    %v225 = vperm.slane %v210, 4
    %v226 = vperm.slane %v210, 5
    %v227 = vperm.slane %v210, 6
    %v228 = vperm.slane %v210, 7
    %vm245 = vcmask 523264
    %v247 = vsel %vm245, %v80, 0
    %249 = vmatpush.msra.mxu0 0.0
    %250 = vmatpush.msra.mxu0 0.0
    %251 = vmatpush.msra.mxu0 0.0
    %252 = vmatpush.msra.mxu0 0.0
    %253 = vmatpush.msra.mxu0 0.0
    %254 = vmatpush.msra.mxu0 0.0
    %255 = vmatpush.msra.mxu0 0.0
    %256 = vmatpush.msra.mxu0 0.0
    %257 = vmatpush.msra.mxu0 %v193
    %258 = vmatpush.msra.mxu0 %v177
    %259 = vmatpush.msra.mxu0 %v161
    %260 = vmatpush.msra.mxu0 %v145
    %261 = vmatpush.msra.mxu0 %v129
    %262 = vmatpush.msra.mxu0 %v113
    %263 = vmatpush.msra.mxu0 %v97
    %264 = vmatpush.msra.mxu0 %v81
    %265 = vmatmul.f32.gmra.mxu0 %v247
    %v266 = vpop.f32.mrf.mxu0
    %v267 = vadd.f32 %v213, %v266
    %268 = vdwg.mxu0
    %269 = vmatpush.msra.mxu0 0.0
    %270 = vmatpush.msra.mxu0 0.0
    %271 = vmatpush.msra.mxu0 0.0
    %272 = vmatpush.msra.mxu0 0.0
    %273 = vmatpush.msra.mxu0 0.0
    %274 = vmatpush.msra.mxu0 0.0
    %275 = vmatpush.msra.mxu0 0.0
    %276 = vmatpush.msra.mxu0 0.0
    %277 = vmatpush.msra.mxu0 %v194
    %278 = vmatpush.msra.mxu0 %v178
    %279 = vmatpush.msra.mxu0 %v162
    %280 = vmatpush.msra.mxu0 %v146
    %281 = vmatpush.msra.mxu0 %v130
    %282 = vmatpush.msra.mxu0 %v114
    %283 = vmatpush.msra.mxu0 %v98
    %284 = vmatpush.msra.mxu0 %v82
    %285 = vmatmul.f32.gmra.mxu0 %v247
    %v286 = vpop.f32.mrf.mxu0
    %v287 = vadd.f32 %v214, %v286
    %288 = vdwg.mxu0
    %289 = vmatpush.msra.mxu0 0.0
    %290 = vmatpush.msra.mxu0 0.0
    %291 = vmatpush.msra.mxu0 0.0
    %292 = vmatpush.msra.mxu0 0.0
    %293 = vmatpush.msra.mxu0 0.0
    %294 = vmatpush.msra.mxu0 0.0
    %295 = vmatpush.msra.mxu0 0.0
    %296 = vmatpush.msra.mxu0 0.0
    %297 = vmatpush.msra.mxu0 %v195
    %298 = vmatpush.msra.mxu0 %v179
    %299 = vmatpush.msra.mxu0 %v163
    %300 = vmatpush.msra.mxu0 %v147
    %301 = vmatpush.msra.mxu0 %v131
    %302 = vmatpush.msra.mxu0 %v115
    %303 = vmatpush.msra.mxu0 %v99
    %304 = vmatpush.msra.mxu0 %v83
    %305 = vmatmul.f32.gmra.mxu0 %v247
    %v306 = vpop.f32.mrf.mxu0
    %v307 = vadd.f32 %v215, %v306
    %308 = vdwg.mxu0
    %309 = vmatpush.msra.mxu0 0.0
    %310 = vmatpush.msra.mxu0 0.0
    %311 = vmatpush.msra.mxu0 0.0
    %312 = vmatpush.msra.mxu0 0.0
    %313 = vmatpush.msra.mxu0 0.0
    %314 = vmatpush.msra.mxu0 0.0
    %315 = vmatpush.msra.mxu0 0.0
    %316 = vmatpush.msra.mxu0 0.0
    %317 = vmatpush.msra.mxu0 %v196
    %318 = vmatpush.msra.mxu0 %v180
    %319 = vmatpush.msra.mxu0 %v164
    %320 = vmatpush.msra.mxu0 %v148
    %321 = vmatpush.msra.mxu0 %v132
    %322 = vmatpush.msra.mxu0 %v116
    %323 = vmatpush.msra.mxu0 %v100
    %324 = vmatpush.msra.mxu0 %v84
    %325 = vmatmul.f32.gmra.mxu0 %v247
    %v326 = vpop.f32.mrf.mxu0
    %v327 = vadd.f32 %v216, %v326
    %328 = vdwg.mxu0
    %329 = vmatpush.msra.mxu0 0.0
    %330 = vmatpush.msra.mxu0 0.0
    %331 = vmatpush.msra.mxu0 0.0
    %332 = vmatpush.msra.mxu0 0.0
    %333 = vmatpush.msra.mxu0 0.0
    %334 = vmatpush.msra.mxu0 0.0
    %335 = vmatpush.msra.mxu0 0.0
    %336 = vmatpush.msra.mxu0 0.0
    %337 = vmatpush.msra.mxu0 %v197
    %338 = vmatpush.msra.mxu0 %v181
    %339 = vmatpush.msra.mxu0 %v165
    %340 = vmatpush.msra.mxu0 %v149
    %341 = vmatpush.msra.mxu0 %v133
    %342 = vmatpush.msra.mxu0 %v117
    %343 = vmatpush.msra.mxu0 %v101
    %344 = vmatpush.msra.mxu0 %v85
    %345 = vmatmul.f32.gmra.mxu0 %v247
    %v346 = vpop.f32.mrf.mxu0
    %v347 = vadd.f32 %v217, %v346
    %348 = vdwg.mxu0
    %349 = vmatpush.msra.mxu0 0.0
    %350 = vmatpush.msra.mxu0 0.0
    %351 = vmatpush.msra.mxu0 0.0
    %352 = vmatpush.msra.mxu0 0.0
    %353 = vmatpush.msra.mxu0 0.0
    %354 = vmatpush.msra.mxu0 0.0
    %355 = vmatpush.msra.mxu0 0.0
    %356 = vmatpush.msra.mxu0 0.0
    %357 = vmatpush.msra.mxu0 %v198
    %358 = vmatpush.msra.mxu0 %v182
    %359 = vmatpush.msra.mxu0 %v166
    %360 = vmatpush.msra.mxu0 %v150
    %361 = vmatpush.msra.mxu0 %v134
    %362 = vmatpush.msra.mxu0 %v118
    %363 = vmatpush.msra.mxu0 %v102
    %364 = vmatpush.msra.mxu0 %v86
    %365 = vmatmul.f32.gmra.mxu0 %v247
    %v366 = vpop.f32.mrf.mxu0
    %v367 = vadd.f32 %v218, %v366
    %368 = vdwg.mxu0
    %369 = vmatpush.msra.mxu0 0.0
    %370 = vmatpush.msra.mxu0 0.0
    %371 = vmatpush.msra.mxu0 0.0
    %372 = vmatpush.msra.mxu0 0.0
    %373 = vmatpush.msra.mxu0 0.0
    %374 = vmatpush.msra.mxu0 0.0
    %375 = vmatpush.msra.mxu0 0.0
    %376 = vmatpush.msra.mxu0 0.0
    %377 = vmatpush.msra.mxu0 %v199
    %378 = vmatpush.msra.mxu0 %v183
    %379 = vmatpush.msra.mxu0 %v167
    %380 = vmatpush.msra.mxu0 %v151
    %381 = vmatpush.msra.mxu0 %v135
    %382 = vmatpush.msra.mxu0 %v119
    %383 = vmatpush.msra.mxu0 %v103
    %384 = vmatpush.msra.mxu0 %v87
    %385 = vmatmul.f32.gmra.mxu0 %v247
    %v386 = vpop.f32.mrf.mxu0
    %v387 = vadd.f32 %v219, %v386
    %388 = vdwg.mxu0
    %389 = vmatpush.msra.mxu0 0.0
    %390 = vmatpush.msra.mxu0 0.0
    %391 = vmatpush.msra.mxu0 0.0
    %392 = vmatpush.msra.mxu0 0.0
    %393 = vmatpush.msra.mxu0 0.0
    %394 = vmatpush.msra.mxu0 0.0
    %395 = vmatpush.msra.mxu0 0.0
    %396 = vmatpush.msra.mxu0 0.0
    %397 = vmatpush.msra.mxu0 %v200
    %398 = vmatpush.msra.mxu0 %v184
    %399 = vmatpush.msra.mxu0 %v168
    %400 = vmatpush.msra.mxu0 %v152
    %401 = vmatpush.msra.mxu0 %v136
    %402 = vmatpush.msra.mxu0 %v120
    %403 = vmatpush.msra.mxu0 %v104
    %404 = vmatpush.msra.mxu0 %v88
    %405 = vmatmul.f32.gmra.mxu0 %v247
    %v406 = vpop.f32.mrf.mxu0
    %v407 = vadd.f32 %v220, %v406
    %408 = vdwg.mxu0
    %409 = vmatpush.msra.mxu0 0.0
    %410 = vmatpush.msra.mxu0 0.0
    %411 = vmatpush.msra.mxu0 0.0
    %412 = vmatpush.msra.mxu0 0.0
    %413 = vmatpush.msra.mxu0 0.0
    %414 = vmatpush.msra.mxu0 0.0
    %415 = vmatpush.msra.mxu0 0.0
    %416 = vmatpush.msra.mxu0 0.0
    %417 = vmatpush.msra.mxu0 %v201
    %418 = vmatpush.msra.mxu0 %v185
    %419 = vmatpush.msra.mxu0 %v169
    %420 = vmatpush.msra.mxu0 %v153
    %421 = vmatpush.msra.mxu0 %v137
    %422 = vmatpush.msra.mxu0 %v121
    %423 = vmatpush.msra.mxu0 %v105
    %424 = vmatpush.msra.mxu0 %v89
    %425 = vmatmul.f32.gmra.mxu0 %v247
    %v426 = vpop.f32.mrf.mxu0
    %v427 = vadd.f32 %v221, %v426
    %428 = vdwg.mxu0
    %429 = vmatpush.msra.mxu0 0.0
    %430 = vmatpush.msra.mxu0 0.0
    %431 = vmatpush.msra.mxu0 0.0
    %432 = vmatpush.msra.mxu0 0.0
    %433 = vmatpush.msra.mxu0 0.0
    %434 = vmatpush.msra.mxu0 0.0
    %435 = vmatpush.msra.mxu0 0.0
    %436 = vmatpush.msra.mxu0 0.0
    %437 = vmatpush.msra.mxu0 %v202
    %438 = vmatpush.msra.mxu0 %v186
    %439 = vmatpush.msra.mxu0 %v170
    %440 = vmatpush.msra.mxu0 %v154
    %441 = vmatpush.msra.mxu0 %v138
    %442 = vmatpush.msra.mxu0 %v122
    %443 = vmatpush.msra.mxu0 %v106
    %444 = vmatpush.msra.mxu0 %v90
    %445 = vmatmul.f32.gmra.mxu0 %v247
    %v446 = vpop.f32.mrf.mxu0
    %v447 = vadd.f32 %v222, %v446
    %448 = vdwg.mxu0
    %449 = vmatpush.msra.mxu0 0.0
    %450 = vmatpush.msra.mxu0 0.0
    %451 = vmatpush.msra.mxu0 0.0
    %452 = vmatpush.msra.mxu0 0.0
    %453 = vmatpush.msra.mxu0 0.0
    %454 = vmatpush.msra.mxu0 0.0
    %455 = vmatpush.msra.mxu0 0.0
    %456 = vmatpush.msra.mxu0 0.0
    %457 = vmatpush.msra.mxu0 %v203
    %458 = vmatpush.msra.mxu0 %v187
    %459 = vmatpush.msra.mxu0 %v171
    %460 = vmatpush.msra.mxu0 %v155
    %461 = vmatpush.msra.mxu0 %v139
    %462 = vmatpush.msra.mxu0 %v123
    %463 = vmatpush.msra.mxu0 %v107
    %464 = vmatpush.msra.mxu0 %v91
    %465 = vmatmul.f32.gmra.mxu0 %v247
    %v466 = vpop.f32.mrf.mxu0
    %v467 = vadd.f32 %v223, %v466
    %468 = vdwg.mxu0
    %469 = vmatpush.msra.mxu0 0.0
    %470 = vmatpush.msra.mxu0 0.0
    %471 = vmatpush.msra.mxu0 0.0
    %472 = vmatpush.msra.mxu0 0.0
    %473 = vmatpush.msra.mxu0 0.0
    %474 = vmatpush.msra.mxu0 0.0
    %475 = vmatpush.msra.mxu0 0.0
    %476 = vmatpush.msra.mxu0 0.0
    %477 = vmatpush.msra.mxu0 %v204
    %478 = vmatpush.msra.mxu0 %v188
    %479 = vmatpush.msra.mxu0 %v172
    %480 = vmatpush.msra.mxu0 %v156
    %481 = vmatpush.msra.mxu0 %v140
    %482 = vmatpush.msra.mxu0 %v124
    %483 = vmatpush.msra.mxu0 %v108
    %484 = vmatpush.msra.mxu0 %v92
    %485 = vmatmul.f32.gmra.mxu0 %v247
    %v486 = vpop.f32.mrf.mxu0
    %v487 = vadd.f32 %v224, %v486
    %488 = vdwg.mxu0
    %489 = vmatpush.msra.mxu0 0.0
    %490 = vmatpush.msra.mxu0 0.0
    %491 = vmatpush.msra.mxu0 0.0
    %492 = vmatpush.msra.mxu0 0.0
    %493 = vmatpush.msra.mxu0 0.0
    %494 = vmatpush.msra.mxu0 0.0
    %495 = vmatpush.msra.mxu0 0.0
    %496 = vmatpush.msra.mxu0 0.0
    %497 = vmatpush.msra.mxu0 %v205
    %498 = vmatpush.msra.mxu0 %v189
    %499 = vmatpush.msra.mxu0 %v173
    %500 = vmatpush.msra.mxu0 %v157
    %501 = vmatpush.msra.mxu0 %v141
    %502 = vmatpush.msra.mxu0 %v125
    %503 = vmatpush.msra.mxu0 %v109
    %504 = vmatpush.msra.mxu0 %v93
    %505 = vmatmul.f32.gmra.mxu0 %v247
    %v506 = vpop.f32.mrf.mxu0
    %v507 = vadd.f32 %v225, %v506
    %508 = vdwg.mxu0
    %509 = vmatpush.msra.mxu0 0.0
    %510 = vmatpush.msra.mxu0 0.0
    %511 = vmatpush.msra.mxu0 0.0
    %512 = vmatpush.msra.mxu0 0.0
    %513 = vmatpush.msra.mxu0 0.0
    %514 = vmatpush.msra.mxu0 0.0
    %515 = vmatpush.msra.mxu0 0.0
    %516 = vmatpush.msra.mxu0 0.0
    %517 = vmatpush.msra.mxu0 %v206
    %518 = vmatpush.msra.mxu0 %v190
    %519 = vmatpush.msra.mxu0 %v174
    %520 = vmatpush.msra.mxu0 %v158
    %521 = vmatpush.msra.mxu0 %v142
    %522 = vmatpush.msra.mxu0 %v126
    %523 = vmatpush.msra.mxu0 %v110
    %524 = vmatpush.msra.mxu0 %v94
    %525 = vmatmul.f32.gmra.mxu0 %v247
    %v526 = vpop.f32.mrf.mxu0
    %v527 = vadd.f32 %v226, %v526
    %528 = vdwg.mxu0
    %529 = vmatpush.msra.mxu0 0.0
    %530 = vmatpush.msra.mxu0 0.0
    %531 = vmatpush.msra.mxu0 0.0
    %532 = vmatpush.msra.mxu0 0.0
    %533 = vmatpush.msra.mxu0 0.0
    %534 = vmatpush.msra.mxu0 0.0
    %535 = vmatpush.msra.mxu0 0.0
    %536 = vmatpush.msra.mxu0 0.0
    %537 = vmatpush.msra.mxu0 %v207
    %538 = vmatpush.msra.mxu0 %v191
    %539 = vmatpush.msra.mxu0 %v175
    %540 = vmatpush.msra.mxu0 %v159
    %541 = vmatpush.msra.mxu0 %v143
    %542 = vmatpush.msra.mxu0 %v127
    %543 = vmatpush.msra.mxu0 %v111
    %544 = vmatpush.msra.mxu0 %v95
    %545 = vmatmul.f32.gmra.mxu0 %v247
    %v546 = vpop.f32.mrf.mxu0
    %v547 = vadd.f32 %v227, %v546
    %548 = vdwg.mxu0
    %549 = vmatpush.msra.mxu0 0.0
    %550 = vmatpush.msra.mxu0 0.0
    %551 = vmatpush.msra.mxu0 0.0
    %552 = vmatpush.msra.mxu0 0.0
    %553 = vmatpush.msra.mxu0 0.0
    %554 = vmatpush.msra.mxu0 0.0
    %555 = vmatpush.msra.mxu0 0.0
    %556 = vmatpush.msra.mxu0 0.0
    %557 = vmatpush.msra.mxu0 %v208
    %558 = vmatpush.msra.mxu0 %v192
    %559 = vmatpush.msra.mxu0 %v176
    %560 = vmatpush.msra.mxu0 %v160
    %561 = vmatpush.msra.mxu0 %v144
    %562 = vmatpush.msra.mxu0 %v128
    %563 = vmatpush.msra.mxu0 %v112
    %564 = vmatpush.msra.mxu0 %v96
    %565 = vmatmul.f32.gmra.mxu0 %v247
    %v566 = vpop.f32.mrf.mxu0
    %v567 = vadd.f32 %v228, %v566
    %568 = vdwg.mxu0
    %569 = vst [vmem:[#allocation2] sm:$0x1] %v267
    %570 = vst [vmem:[#allocation2 + $0x1] sm:$0x1] %v287
    %571 = vst [vmem:[#allocation2 + $0x2] sm:$0x1] %v307
    %572 = vst [vmem:[#allocation2 + $0x3] sm:$0x1] %v327
    %573 = vst [vmem:[#allocation2 + $0x4] sm:$0x1] %v347
    %574 = vst [vmem:[#allocation2 + $0x5] sm:$0x1] %v367
    %575 = vst [vmem:[#allocation2 + $0x6] sm:$0x1] %v387
    %576 = vst [vmem:[#allocation2 + $0x7] sm:$0x1] %v407
    %577 = vst [vmem:[#allocation2 + $0x8] sm:$0x1] %v427
    %578 = vst [vmem:[#allocation2 + $0x9] sm:$0x1] %v447
    %579 = vst [vmem:[#allocation2 + $0xa] sm:$0x1] %v467
    %580 = vst [vmem:[#allocation2 + $0xb] sm:$0x1] %v487
    %581 = vst [vmem:[#allocation2 + $0xc] sm:$0x1] %v507
    %582 = vst [vmem:[#allocation2 + $0xd] sm:$0x1] %v527
    %583 = vst [vmem:[#allocation2 + $0xe] sm:$0x1] %v547
    %584 = vst [vmem:[#allocation2 + $0xf] sm:$0x1] %v567
    %v585 = vld [vmem:[#allocation2] sm:$0xff]
    %v586 = vld [vmem:[#allocation2 + $0x8] sm:$0xff]
    %v587 = vld [vmem:[#allocation9] sm:$0xff]
    %v588 = vld [vmem:[#allocation9 + $0x8] sm:$0xff]
    %v589 = vld [vmem:[#allocation9 + $0x10] sm:$0xff]
    %v590 = vld [vmem:[#allocation9 + $0x18] sm:$0xff]
    %v591 = vld [vmem:[#allocation9 + $0x20] sm:$0xff]
    %v592 = vld [vmem:[#allocation9 + $0x28] sm:$0xff]
    %v593 = vld [vmem:[#allocation9 + $0x30] sm:$0xff]
    %v594 = vld [vmem:[#allocation9 + $0x38] sm:$0xff]
    %v595 = vld [vmem:[#allocation9 + $0x40] sm:$0xff]
    %v596 = vld [vmem:[#allocation9 + $0x48] sm:$0xff]
    %v597 = vld [vmem:[#allocation9 + $0x50] sm:$0xff]
    %v598 = vld [vmem:[#allocation9 + $0x58] sm:$0xff]
    %v599 = vld [vmem:[#allocation9 + $0x60] sm:$0xff]
    %v600 = vld [vmem:[#allocation9 + $0x68] sm:$0xff]
    %v601 = vld [vmem:[#allocation9 + $0x70] sm:$0xff]
    %v602 = vld [vmem:[#allocation9 + $0x78] sm:$0xff]
    %v603 = vld [vmem:[#allocation9 + $0x80] sm:$0xff]
    %v604 = vld [vmem:[#allocation9 + $0x88] sm:$0xff]
    %v605 = vld [vmem:[#allocation9 + $0x90] sm:$0xff]
    %v606 = vld [vmem:[#allocation9 + $0x98] sm:$0xff]
    %v607 = vld [vmem:[#allocation9 + $0xa0] sm:$0xff]
    %v608 = vld [vmem:[#allocation9 + $0xa8] sm:$0xff]
    %v609 = vld [vmem:[#allocation9 + $0xb0] sm:$0xff]
    %v610 = vld [vmem:[#allocation9 + $0xb8] sm:$0xff]
    %v611 = vld [vmem:[#allocation9 + $0xc0] sm:$0xff]
    %v612 = vld [vmem:[#allocation9 + $0xc8] sm:$0xff]
    %v613 = vld [vmem:[#allocation9 + $0xd0] sm:$0xff]
    %v614 = vld [vmem:[#allocation9 + $0xd8] sm:$0xff]
    %v615 = vld [vmem:[#allocation9 + $0xe0] sm:$0xff]
    %v616 = vld [vmem:[#allocation9 + $0xe8] sm:$0xff]
    %v617 = vld [vmem:[#allocation9 + $0xf0] sm:$0xff]
    %v618 = vld [vmem:[#allocation9 + $0xf8] sm:$0xff]
    %v619 = vld [vmem:[%s4] sm:$0x3]
    %v621 = vperm.slane %v619, 0
    %v622 = vperm.slane %v619, 1
    %625 = vmatpush.msra.mxu0 %v617
    %626 = vmatpush.msra.mxu0 %v615
    %627 = vmatpush.msra.mxu0 %v613
    %628 = vmatpush.msra.mxu0 %v611
    %629 = vmatpush.msra.mxu0 %v609
    %630 = vmatpush.msra.mxu0 %v607
    %631 = vmatpush.msra.mxu0 %v605
    %632 = vmatpush.msra.mxu0 %v603
    %633 = vmatpush.msra.mxu0 %v601
    %634 = vmatpush.msra.mxu0 %v599
    %635 = vmatpush.msra.mxu0 %v597
    %636 = vmatpush.msra.mxu0 %v595
    %637 = vmatpush.msra.mxu0 %v593
    %638 = vmatpush.msra.mxu0 %v591
    %639 = vmatpush.msra.mxu0 %v589
    %640 = vmatpush.msra.mxu0 %v587
    %641 = vmatmul.f32.gmra.mxu0 %v585
    %v642 = vpop.f32.mrf.mxu0
    %v643 = vadd.f32 %v621, %v642
    %644 = vmatmul.f32.gmra.mxu0 %v586
    %v645 = vpop.f32.mrf.mxu0
    %v646 = vadd.f32 %v621, %v645
    %647 = vdwg.mxu0
    %648 = vmatpush.msra.mxu0 %v618
    %649 = vmatpush.msra.mxu0 %v616
    %650 = vmatpush.msra.mxu0 %v614
    %651 = vmatpush.msra.mxu0 %v612
    %652 = vmatpush.msra.mxu0 %v610
    %653 = vmatpush.msra.mxu0 %v608
    %654 = vmatpush.msra.mxu0 %v606
    %655 = vmatpush.msra.mxu0 %v604
    %656 = vmatpush.msra.mxu0 %v602
    %657 = vmatpush.msra.mxu0 %v600
    %658 = vmatpush.msra.mxu0 %v598
    %659 = vmatpush.msra.mxu0 %v596
    %660 = vmatpush.msra.mxu0 %v594
    %661 = vmatpush.msra.mxu0 %v592
    %662 = vmatpush.msra.mxu0 %v590
    %663 = vmatpush.msra.mxu0 %v588
    %664 = vmatmul.f32.gmra.mxu0 %v585
    %v665 = vpop.f32.mrf.mxu0
    %v666 = vadd.f32 %v622, %v665
    %667 = vmatmul.f32.gmra.mxu0 %v586
    %v668 = vpop.f32.mrf.mxu0
    %v669 = vadd.f32 %v622, %v668
    %670 = vdwg.mxu0
    %671 = vst [vmem:[#allocation11] sm:$0xff] %v643
    %672 = vst [vmem:[#allocation11 + $0x8] sm:$0xff] %v666
    %673 = vst [vmem:[#allocation11 + $0x10] sm:$0xff] %v646
    %674 = vst [vmem:[#allocation11 + $0x18] sm:$0xff] %v669
    // Predicated region
    $region38: #{tpu_custom_call.1} parent=1 // pred_check
      _
    $region39: #{tpu_custom_call.1} parent=1 // pred_check_branch
      %676 = sbr.rel (0) target = $region41
    $region40: #{tpu_custom_call.1} parent=1 // pred_region
      %678 = vsyncadd [#allocation5], 0
      %s679 = sshll.u32 [#allocation11], 4
      %s680 = int_to_ptr.vmem [resolvable:$true] %s679
      %s681 = sshll.u32 %s5, 4
      %s682 = int_to_ptr.hbm [resolvable:$true] %s681
      %687 = dma.vmem_to_hbm [thread:$0]  %s680, 512, %s682, [#allocation5], 256, 256, 16
    $region41: #{tpu_custom_call.1} parent=1 // pred_fallthru
      _
    // Predicated region
    $region42: #{tpu_custom_call.1} parent=1 // pred_check
      _
    $region43: #{tpu_custom_call.1} parent=1 // pred_check_branch
      %689 = sbr.rel (0) target = $region45
    $region44: #{tpu_custom_call.1} parent=1 // pred_region
      %691 = dma.done [#allocation5], 512
    $region45: #{tpu_custom_call.1} parent=1 // pred_fallthru
      _
    %692 = vsyncpa [#allocation4], 1
    %693 = vsyncpa [#allocation7], 1
    %694 = vsyncpa [#allocation10], 1
    %695 = vsyncpa [#allocation5], 1

</llo_original>
